<compile_context>
chip_gen: v7x
topology: tpu7x:2x2x1
jax: 0.10.0
libtpu: 0.0.40
codegen_flags: <defaults>
</compile_context>

<pallas_src>
import jax
import jax.numpy as jnp
import numpy as np
from jax import lax
from jax.experimental import pallas as pl
from jax.experimental.pallas import tpu as pltpu


def _round_up(x, m):
    return ((x + m - 1) // m) * m


def _make_kernel(k0, gl, left0, Nc, n_valid, use_bottleneck, eps):
    """Fused Inception kernel.

    k0: largest kernel size, gl: global left halo width, left0: left 'same' pad of the
    largest kernel, Nc: lane-padded folded width, n_valid: number of real columns.
    """
    inv_n = 1.0 / n_valid

    def kernel(*refs):
        if use_bottleneck:
            (x_ref, wb_ref, w_ref, gamma_ref, beta_ref,
             vmask_ref, ladd_ref, radd_ref, out_ref) = refs
        else:
            (x_ref, w_ref, gamma_ref, beta_ref,
             vmask_ref, ladd_ref, radd_ref, out_ref) = refs

        x = x_ref[...]                                   # (C, Ng) bf16, zero padded + halo

        # ---- bottleneck 1x1 conv: one bf16 MXU matmul over every padded column.
        #      (1x1, no bias => commutes with zero padding.)
        if use_bottleneck:
            y = jnp.dot(wb_ref[...], x,
                        preferred_element_type=jnp.float32).astype(jnp.bfloat16)
        else:
            y = x                                        # (Cb, Ng) bf16

        # ---- im2col over taps, built IN REGISTERS (no VMEM staging round-trip).
        taps = [y[:, gl - left0 + j: gl - left0 + j + Nc] for j in range(k0)]

        # ---- MaxPool1d(3, stride 1, pad 1) in bf16: sequence edges act as -inf
        #      via additive mask rows (per-batch interior pads are plain zeros).
        center = x[:, gl:gl + Nc]
        lnbr = x[:, gl - 1:gl - 1 + Nc] + ladd_ref[...]
        rnbr = x[:, gl + 1:gl + 1 + Nc] + radd_ref[...]
        mp = jnp.maximum(jnp.maximum(lnbr, center), rnbr)        # (C, Nc) bf16

        # ---- single fused bf16 MXU matmul: 3 conv branches + pool 1x1 conv.
        rhs = jnp.concatenate(taps + [mp], axis=0)               # (k0*Cb + C, Nc) bf16
        vals = jnp.dot(w_ref[...], rhs,
                       preferred_element_type=jnp.float32)       # (4*nb, Nc) f32

        # ---- BatchNorm1d (training: biased batch stats over the real columns) + ReLU,
        #      one masked pass: mean and E[x^2] from the same masked values.
        vm = vmask_ref[...]                              # (1, Nc) f32, 1.0 at real cols
        vals_m = vals * vm
        mean = jnp.sum(vals_m, axis=1, keepdims=True) * inv_n
        var = jnp.sum(vals_m * vals_m, axis=1, keepdims=True) * inv_n - mean * mean
        yn = gamma_ref[...] * (vals - mean) * lax.rsqrt(var + eps) + beta_ref[...]
        out_ref[...] = jnp.maximum(yn, 0.0)              # single lane-dense store

    return kernel


def inception_forward(x, params, *, kernel_size, use_bottleneck, eps=1e-5):
    B, C, L = x.shape
    ksizes = [kernel_size // (2 ** i) for i in range(3)]
    lefts = [(k - 1) // 2 for k in ksizes]
    rights = [k - 1 - l for k, l in zip(ksizes, lefts)]
    k0, left0 = ksizes[0], lefts[0]
    padL = max(left0, 1)                 # >=1 so maxpool neighbours exist
    padR = max(rights[0], 1)
    Lp = padL + L + padR
    Nc_raw = B * Lp                      # folded lane width (all batches)
    Nc = _round_up(max(Nc_raw, 128), 128)  # lane-dense (multiple of 128)
    gl = padL                            # global halo width (left)

    nb = params["w6"].shape[0]
    use_bn_branch = use_bottleneck and (L > 1)
    Cb = params["w_bottleneck"].shape[0] if use_bn_branch else C
    if params["w_convs"][0].shape[-1] != Cb:
        # Inherited from the PyTorch module: with use_bottleneck and L<=1 the bottleneck
        # is bypassed, so the conv weights must have in_filters input channels.
        raise ValueError("conv weight input channels do not match the (L<=1) bottleneck bypass")

    # ---- layout plumbing (XLA side): per-batch pad, fold batch onto the lane axis,
    #      add a global halo, lane-pad to a 128 multiple, and ship as bf16.
    xpad = jnp.pad(x, ((0, 0), (0, 0), (padL, padR)))                 # (B, C, Lp)
    xfold = jnp.transpose(xpad, (1, 0, 2)).reshape(C, Nc_raw)          # (C, Nc_raw)
    Ng = _round_up(padL + Nc + padR, 128)
    xg = jnp.pad(xfold, ((0, 0), (padL, Ng - padL - Nc_raw))).astype(jnp.bfloat16)

    # ---- one block-sparse fused weight (4*nb, k0*Cb + C):
    #      rows [0,3*nb): merged conv branches over the k0 taps,
    #      rows [3*nb,4*nb): the maxpool 1x1 conv over the C pooled channels.
    Kdim = k0 * Cb + C
    Wc = jnp.zeros((3 * nb, k0, Cb), jnp.float32)
    for i, (w, k, l) in enumerate(zip(params["w_convs"], ksizes, lefts)):
        off = left0 - l
        Wc = Wc.at[i * nb:(i + 1) * nb, off:off + k, :].set(jnp.transpose(w, (1, 0, 2)))
    W = jnp.zeros((4 * nb, Kdim), jnp.float32)
    W = W.at[0:3 * nb, 0:k0 * Cb].set(Wc.reshape(3 * nb, k0 * Cb))
    W = W.at[3 * nb:4 * nb, k0 * Cb:Kdim].set(params["w6"])
    W = W.astype(jnp.bfloat16)

    # ---- masks for the folded, lane-padded layout (built once on host):
    #      which columns are real, and which are a sequence edge for the maxpool.
    pos = np.arange(Nc)
    ppos = pos % Lp
    real = (pos < Nc_raw) & (ppos >= padL) & (ppos < padL + L)
    vmask = real.astype(np.float32)[None, :]
    ladd = np.where(real & (ppos == padL), -np.inf, 0.0).astype(np.float32)[None, :]
    radd = np.where(real & (ppos == padL + L - 1), -np.inf, 0.0).astype(np.float32)[None, :]

    inputs = [xg]
    if use_bn_branch:
        inputs.append(params["w_bottleneck"].astype(jnp.bfloat16))
    inputs += [W, params["gamma"], params["beta"],
               jnp.asarray(vmask),
               jnp.asarray(ladd, dtype=jnp.bfloat16),
               jnp.asarray(radd, dtype=jnp.bfloat16)]

    kernel = _make_kernel(k0, gl, left0, Nc, float(B * L), use_bn_branch, eps)
    out2d = pl.pallas_call(
        kernel,
        out_shape=jax.ShapeDtypeStruct((4 * nb, Nc), jnp.float32),
        in_specs=[pl.BlockSpec(memory_space=pltpu.MemorySpace.VMEM)] * len(inputs),
        out_specs=pl.BlockSpec(memory_space=pltpu.MemorySpace.VMEM),
    )(*inputs)

    # unfold lanes back to (B, 4*nb, L); pure layout work done by XLA.
    out = out2d[:, :Nc_raw].reshape(4 * nb, B, Lp)[:, :, padL:padL + L]
    return jnp.transpose(out, (1, 0, 2))


def init_params(key, in_filters, nb_filters, kernel_size, use_bottleneck, bottleneck_size):
    ksizes = [kernel_size // (2 ** i) for i in range(3)]
    cb = bottleneck_size if use_bottleneck else in_filters
    keys = jax.random.split(key, 7)
    params = {}
    if use_bottleneck:
        params["w_bottleneck"] = 0.1 * jax.random.normal(
            keys[0], (bottleneck_size, in_filters), jnp.float32)          # (O, I) 1x1
    params["w_convs"] = tuple(
        0.1 * jax.random.normal(k, (ks, nb_filters, cb), jnp.float32)     # (k, O, I)
        for k, ks in zip(keys[1:4], ksizes))
    params["w6"] = 0.1 * jax.random.normal(keys[4], (nb_filters, in_filters), jnp.float32)
    params["gamma"] = 1.0 + 0.1 * jax.random.normal(keys[5], (4 * nb_filters, 1), jnp.float32)
    params["beta"] = 0.1 * jax.random.normal(keys[6], (4 * nb_filters, 1), jnp.float32)
    return params


def reference_forward(x, params, *, kernel_size, use_bottleneck, eps=1e-5):
    """Pure-JAX reference (lax.conv / reduce_window).

    Matmul operands are rounded to bf16 (accumulation in f32) to mirror the
    kernel's bf16 MXU path, so the comparison tolerance can stay tight.
    """
    q = lambda a: a.astype(jnp.bfloat16).astype(jnp.float32)

    def conv_same(inp, w_oik):
        k = w_oik.shape[-1]
        left = (k - 1) // 2
        return lax.conv_general_dilated(
            inp, w_oik, window_strides=(1,), padding=[(left, k - 1 - left)],
            dimension_numbers=("NCH", "OIH", "NCH"))

    B, C, L = x.shape
    xq = q(x)
    if use_bottleneck and L > 1:
        y = q(conv_same(xq, q(params["w_bottleneck"])[:, :, None]))
    else:
        y = xq
    outs = [conv_same(y, q(jnp.transpose(w, (1, 2, 0)))) for w in params["w_convs"]]
    mp = lax.reduce_window(xq, -jnp.inf, lax.max, (1, 1, 3), (1, 1, 1),
                           [(0, 0), (0, 0), (1, 1)])
    outs.append(conv_same(mp, q(params["w6"])[:, :, None]))
    cat = jnp.concatenate(outs, axis=1)
    mean = jnp.mean(cat, axis=(0, 2), keepdims=True)
    var = jnp.mean((cat - mean) ** 2, axis=(0, 2), keepdims=True)
    g = params["gamma"].reshape(1, -1, 1)
    b = params["beta"].reshape(1, -1, 1)
    return jnp.maximum(g * (cat - mean) * lax.rsqrt(var + eps) + b, 0.0)


if __name__ == "__main__":
    key = jax.random.PRNGKey(0)
    kx, kp = jax.random.split(key)

    B, in_filters, L = 2, 4, 16
    nb_filters, kernel_size = 8, 8
    use_bottleneck, bottleneck_size = True, 4

    x = jax.random.normal(kx, (B, in_filters, L), jnp.float32)
    params = init_params(kp, in_filters, nb_filters, kernel_size,
                         use_bottleneck, bottleneck_size)

    out = inception_forward(x, params, kernel_size=kernel_size,
                            use_bottleneck=use_bottleneck)
    out = jax.block_until_ready(out)

    ref = reference_forward(x, params, kernel_size=kernel_size,
                            use_bottleneck=use_bottleneck)
    assert out.shape == (B, 4 * nb_filters, L)
    np.testing.assert_allclose(np.asarray(out), np.asarray(ref), atol=5e-3, rtol=5e-3)
    print("KERNEL_OK")
</pallas_src>

<mosaic_0001>
module attributes {stable_mosaic.version = 11 : i64} {
  func.func @kernel(%arg0: memref<4x256xbf16, #tpu.memory_space<vmem>>, %arg1: memref<4x4xbf16, #tpu.memory_space<vmem>>, %arg2: memref<32x36xbf16, #tpu.memory_space<vmem>>, %arg3: memref<32x1xf32, #tpu.memory_space<vmem>>, %arg4: memref<32x1xf32, #tpu.memory_space<vmem>>, %arg5: memref<1x128xf32, #tpu.memory_space<vmem>>, %arg6: memref<1x128xbf16, #tpu.memory_space<vmem>>, %arg7: memref<1x128xbf16, #tpu.memory_space<vmem>>, %arg8: memref<32x128xf32, #tpu.memory_space<vmem>>) attributes {dimension_semantics = [], scalar_prefetch = 0 : i64, scratch_operands = 0 : i64, tpu.core_type = #tpu.core_type<tc>} {
    %c0 = arith.constant 0 : index
    %c0_0 = arith.constant 0 : index
    %0 = vector.load %arg0[%c0, %c0_0] : memref<4x256xbf16, #tpu.memory_space<vmem>>, vector<4x256xbf16>
    %c0_1 = arith.constant 0 : index
    %c0_2 = arith.constant 0 : index
    %1 = vector.load %arg1[%c0_1, %c0_2] : memref<4x4xbf16, #tpu.memory_space<vmem>>, vector<4x4xbf16>
    %cst = arith.constant dense<0.000000e+00> : vector<4x256xf32>
    %2 = tpu.matmul %1, %0, %cst {dimension_numbers = #tpu.dot_dimension_numbers<[1], [0], [0], [1], [0, 0, 1, 1], [], []>} : vector<4x4xbf16>, vector<4x256xbf16>, vector<4x256xf32> -> vector<4x256xf32>
    %3 = arith.truncf %2 : vector<4x256xf32> to vector<4x256xbf16>
    %4 = vector.extract_strided_slice %3 {offsets = [0, 0], sizes = [4, 128], strides = [1, 1]} : vector<4x256xbf16> to vector<4x128xbf16>
    %5 = vector.extract_strided_slice %3 {offsets = [0, 1], sizes = [4, 128], strides = [1, 1]} : vector<4x256xbf16> to vector<4x128xbf16>
    %6 = vector.extract_strided_slice %3 {offsets = [0, 2], sizes = [4, 128], strides = [1, 1]} : vector<4x256xbf16> to vector<4x128xbf16>
    %7 = vector.extract_strided_slice %3 {offsets = [0, 3], sizes = [4, 128], strides = [1, 1]} : vector<4x256xbf16> to vector<4x128xbf16>
    %8 = vector.extract_strided_slice %3 {offsets = [0, 4], sizes = [4, 128], strides = [1, 1]} : vector<4x256xbf16> to vector<4x128xbf16>
    %9 = vector.extract_strided_slice %3 {offsets = [0, 5], sizes = [4, 128], strides = [1, 1]} : vector<4x256xbf16> to vector<4x128xbf16>
    %10 = vector.extract_strided_slice %3 {offsets = [0, 6], sizes = [4, 128], strides = [1, 1]} : vector<4x256xbf16> to vector<4x128xbf16>
    %11 = vector.extract_strided_slice %3 {offsets = [0, 7], sizes = [4, 128], strides = [1, 1]} : vector<4x256xbf16> to vector<4x128xbf16>
    %12 = vector.extract_strided_slice %0 {offsets = [0, 3], sizes = [4, 128], strides = [1, 1]} : vector<4x256xbf16> to vector<4x128xbf16>
    %13 = vector.extract_strided_slice %0 {offsets = [0, 2], sizes = [4, 128], strides = [1, 1]} : vector<4x256xbf16> to vector<4x128xbf16>
    %c0_3 = arith.constant 0 : index
    %c0_4 = arith.constant 0 : index
    %14 = vector.load %arg6[%c0_3, %c0_4] : memref<1x128xbf16, #tpu.memory_space<vmem>>, vector<1x128xbf16>
    %15 = vector.broadcast %14 : vector<1x128xbf16> to vector<4x128xbf16>
    %16 = arith.addf %13, %15 : vector<4x128xbf16>
    %17 = vector.extract_strided_slice %0 {offsets = [0, 4], sizes = [4, 128], strides = [1, 1]} : vector<4x256xbf16> to vector<4x128xbf16>
    %c0_5 = arith.constant 0 : index
    %c0_6 = arith.constant 0 : index
    %18 = vector.load %arg7[%c0_5, %c0_6] : memref<1x128xbf16, #tpu.memory_space<vmem>>, vector<1x128xbf16>
    %19 = vector.broadcast %18 : vector<1x128xbf16> to vector<4x128xbf16>
    %20 = arith.addf %17, %19 : vector<4x128xbf16>
    %21 = arith.maximumf %16, %12 : vector<4x128xbf16>
    %22 = arith.maximumf %21, %20 : vector<4x128xbf16>
    %23 = tpu.concatenate %4, %5, %6, %7, %8, %9, %10, %11, %22 in 0 : vector<4x128xbf16>, vector<4x128xbf16>, vector<4x128xbf16>, vector<4x128xbf16>, vector<4x128xbf16>, vector<4x128xbf16>, vector<4x128xbf16>, vector<4x128xbf16>, vector<4x128xbf16> -> vector<36x128xbf16>
    %c0_7 = arith.constant 0 : index
    %c0_8 = arith.constant 0 : index
    %24 = vector.load %arg2[%c0_7, %c0_8] : memref<32x36xbf16, #tpu.memory_space<vmem>>, vector<32x36xbf16>
    %cst_9 = arith.constant dense<0.000000e+00> : vector<32x128xf32>
    %25 = tpu.matmul %24, %23, %cst_9 {dimension_numbers = #tpu.dot_dimension_numbers<[1], [0], [0], [1], [0, 0, 1, 1], [], []>} : vector<32x36xbf16>, vector<36x128xbf16>, vector<32x128xf32> -> vector<32x128xf32>
    %c0_10 = arith.constant 0 : index
    %c0_11 = arith.constant 0 : index
    %26 = vector.load %arg5[%c0_10, %c0_11] : memref<1x128xf32, #tpu.memory_space<vmem>>, vector<1x128xf32>
    %27 = vector.broadcast %26 : vector<1x128xf32> to vector<32x128xf32>
    %28 = arith.mulf %25, %27 : vector<32x128xf32>
    %cst_12 = arith.constant dense<0.000000e+00> : vector<32xf32>
    %29 = vector.multi_reduction <add>, %28, %cst_12 [1] : vector<32x128xf32> to vector<32xf32>
    %30 = vector.shape_cast %29 : vector<32xf32> to vector<32x1xf32>
    %cst_13 = arith.constant 3.125000e-02 : f32
    %31 = vector.broadcast %cst_13 : f32 to vector<32x1xf32>
    %32 = arith.mulf %30, %31 : vector<32x1xf32>
    %33 = arith.mulf %28, %28 : vector<32x128xf32>
    %cst_14 = arith.constant dense<0.000000e+00> : vector<32xf32>
    %34 = vector.multi_reduction <add>, %33, %cst_14 [1] : vector<32x128xf32> to vector<32xf32>
    %35 = vector.shape_cast %34 : vector<32xf32> to vector<32x1xf32>
    %cst_15 = arith.constant 3.125000e-02 : f32
    %36 = vector.broadcast %cst_15 : f32 to vector<32x1xf32>
    %37 = arith.mulf %35, %36 : vector<32x1xf32>
    %38 = arith.mulf %32, %32 : vector<32x1xf32>
    %39 = arith.subf %37, %38 : vector<32x1xf32>
    %c0_16 = arith.constant 0 : index
    %c0_17 = arith.constant 0 : index
    %40 = vector.load %arg3[%c0_16, %c0_17] : memref<32x1xf32, #tpu.memory_space<vmem>>, vector<32x1xf32>
    %41 = vector.broadcast %32 : vector<32x1xf32> to vector<32x128xf32>
    %42 = arith.subf %25, %41 : vector<32x128xf32>
    %43 = vector.broadcast %40 : vector<32x1xf32> to vector<32x128xf32>
    %44 = arith.mulf %43, %42 : vector<32x128xf32>
    %cst_18 = arith.constant 9.99999974E-6 : f32
    %45 = vector.broadcast %cst_18 : f32 to vector<32x1xf32>
    %46 = arith.addf %39, %45 : vector<32x1xf32>
    %47 = math.rsqrt %46 : vector<32x1xf32>
    %48 = vector.broadcast %47 : vector<32x1xf32> to vector<32x128xf32>
    %49 = arith.mulf %44, %48 : vector<32x128xf32>
    %c0_19 = arith.constant 0 : index
    %c0_20 = arith.constant 0 : index
    %50 = vector.load %arg4[%c0_19, %c0_20] : memref<32x1xf32, #tpu.memory_space<vmem>>, vector<32x1xf32>
    %51 = vector.broadcast %50 : vector<32x1xf32> to vector<32x128xf32>
    %52 = arith.addf %49, %51 : vector<32x128xf32>
    %cst_21 = arith.constant 0.000000e+00 : f32
    %53 = vector.broadcast %cst_21 : f32 to vector<32x128xf32>
    %54 = arith.maximumf %52, %53 : vector<32x128xf32>
    %c0_22 = arith.constant 0 : index
    %c0_23 = arith.constant 0 : index
    %55 = vector.load %arg8[%c0_22, %c0_23] : memref<32x128xf32, #tpu.memory_space<vmem>>, vector<32x128xf32>
    tpu.vector_store %arg8[%c0_22, %c0_23], %54 {strides = array<i32>} : memref<32x128xf32, #tpu.memory_space<vmem>>, vector<32x128xf32>,
    return
  }
}

</mosaic_0001>

<llo_original>
// kernel: tpu_custom_call.1
$region0: #{tpu_custom_call.1}
  #allocation0 [shape = 'u32[]', space=smem, size = 0x4, offset = 0x4, fixed_abs, tag = 'smem constant byte address 0x4 - core index']
  #allocation1 [shape = 'u32[144,128]{1,0:T(1,128)}', space=vmem, size = 0x12000, scoped, tag = 'internal scratch']
  %s0 = inlined_call_operand.vmem [shape: bf16[4,256], index: 0, kind: input, shape index: {}]
  %s1 = inlined_call_operand.vmem [shape: bf16[4,4], index: 1, kind: input, shape index: {}]
  %s2 = inlined_call_operand.vmem [shape: bf16[32,36], index: 2, kind: input, shape index: {}]
  %s3 = inlined_call_operand.vmem [shape: f32[32,1], index: 3, kind: input, shape index: {}]
  %s4 = inlined_call_operand.vmem [shape: f32[32,1], index: 4, kind: input, shape index: {}]
  %s5 = inlined_call_operand.vmem [shape: f32[1,128], index: 5, kind: input, shape index: {}]
  %s6 = inlined_call_operand.vmem [shape: bf16[1,128], index: 6, kind: input, shape index: {}]
  %s7 = inlined_call_operand.vmem [shape: bf16[1,128], index: 7, kind: input, shape index: {}]
  %s8 = inlined_call_operand.hbm [shape: f32[32,128], index: 8, kind: output, shape index: {}]
  %s9 = sld [smem:[#allocation0]]
  $region42: #{tpu_custom_call.1} parent=0
    _
  %s11 = ssub.s32 1, %s9
  %s12 = scalar_select 0, %s11, %s9
  $region1: #{tpu_custom_call.1} parent=0
    #allocation2 [shape = 'u8[16384]{0}', space=vmem, size = 0x4000, scoped, tag = 'output window, operand 0, single buffered']
    #allocation3 [shape = 's32[1]{0}', space=sflag, size = 0x4, scoped, tag = 'scoped memory for tpu_custom_call.1']
    %13 = vsyncpa [#allocation3], 0
    // Predicated region
    $region2: #{tpu_custom_call.1} parent=1 // pred_check
      _
    $region3: #{tpu_custom_call.1} parent=1 // pred_check_branch
      %15 = sbr.rel (0) target = $region5
    $region4: #{tpu_custom_call.1} parent=1 // pred_region
      _
    $region5: #{tpu_custom_call.1} parent=1 // pred_fallthru
      _
    // Predicated region
    $region6: #{tpu_custom_call.1} parent=1 // pred_check
      _
    $region7: #{tpu_custom_call.1} parent=1 // pred_check_branch
      %17 = sbr.rel (0) target = $region9
    $region8: #{tpu_custom_call.1} parent=1 // pred_region
      _
    $region9: #{tpu_custom_call.1} parent=1 // pred_fallthru
      _
    // Predicated region
    $region10: #{tpu_custom_call.1} parent=1 // pred_check
      _
    $region11: #{tpu_custom_call.1} parent=1 // pred_check_branch
      %19 = sbr.rel (0) target = $region13
    $region12: #{tpu_custom_call.1} parent=1 // pred_region
      _
    $region13: #{tpu_custom_call.1} parent=1 // pred_fallthru
      _
    // Predicated region
    $region14: #{tpu_custom_call.1} parent=1 // pred_check
      _
    $region15: #{tpu_custom_call.1} parent=1 // pred_check_branch
      %21 = sbr.rel (0) target = $region17
    $region16: #{tpu_custom_call.1} parent=1 // pred_region
      _
    $region17: #{tpu_custom_call.1} parent=1 // pred_fallthru
      _
    // Predicated region
    $region18: #{tpu_custom_call.1} parent=1 // pred_check
      _
    $region19: #{tpu_custom_call.1} parent=1 // pred_check_branch
      %23 = sbr.rel (0) target = $region21
    $region20: #{tpu_custom_call.1} parent=1 // pred_region
      _
    $region21: #{tpu_custom_call.1} parent=1 // pred_fallthru
      _
    // Predicated region
    $region22: #{tpu_custom_call.1} parent=1 // pred_check
      _
    $region23: #{tpu_custom_call.1} parent=1 // pred_check_branch
      %25 = sbr.rel (0) target = $region25
    $region24: #{tpu_custom_call.1} parent=1 // pred_region
      _
    $region25: #{tpu_custom_call.1} parent=1 // pred_fallthru
      _
    // Predicated region
    $region26: #{tpu_custom_call.1} parent=1 // pred_check
      _
    $region27: #{tpu_custom_call.1} parent=1 // pred_check_branch
      %27 = sbr.rel (0) target = $region29
    $region28: #{tpu_custom_call.1} parent=1 // pred_region
      _
    $region29: #{tpu_custom_call.1} parent=1 // pred_fallthru
      _
    // Predicated region
    $region30: #{tpu_custom_call.1} parent=1 // pred_check
      _
    $region31: #{tpu_custom_call.1} parent=1 // pred_check_branch
      %29 = sbr.rel (0) target = $region33
    $region32: #{tpu_custom_call.1} parent=1 // pred_region
      _
    $region33: #{tpu_custom_call.1} parent=1 // pred_fallthru
      _
    %v31 = vld [vmem:[%s0] sm:$0xf]
    %v32 = vld [vmem:[%s1] sm:$0x3]
    %v35 = vunpack.c.l.s4 1983009808
    %v36 = vunpack.c.0.s8 %v35
    %v37 = vlaneseq
    %v38 = vshrl.u32 %v37, 7
    %v39 = vsub.s32 %v36, %v38
    %v40 = vrot.slane %v31, %v39
    %v41 = vcombine.high %v40, %v40
    %vm42 = vcmask 31744
    %v44 = vsel %vm42, %v32, 0
    %vm46 = vcmask 1041408
    %v48 = vsel %vm46, %v40, 0
    %v51 = vsel %vm46, %v41, 0
    %53 = vmatprep.subr.bf16.mxu0 %v51
    %54 = vmatpush1.bf16.msra.mxu0 %v48
    %55 = vmatprep.subr.bf16.mxu0 0
    %56 = vmatpush1.bf16.msra.mxu0 0
    %57 = vmatprep.subr.bf16.mxu0 0
    %58 = vmatpush1.bf16.msra.mxu0 0
    %59 = vmatprep.subr.bf16.mxu0 0
    %60 = vmatpush1.bf16.msra.mxu0 0
    %61 = vmatprep.subr.bf16.mxu0 0
    %62 = vmatpush1.bf16.msra.mxu0 0
    %63 = vmatprep.subr.bf16.mxu0 0
    %64 = vmatpush1.bf16.msra.mxu0 0
    %65 = vmatprep.subr.bf16.mxu0 0
    %66 = vmatpush1.bf16.msra.mxu0 0
    %67 = vmatprep.subr.bf16.mxu0 0
    %68 = vmatpush1.bf16.msra.mxu0 0
    %69 = vmatprep.subr.bf16.mxu0 0
    %70 = vmatpush1.bf16.msra.mxu0 0
    %71 = vmatprep.subr.bf16.mxu0 0
    %72 = vmatpush1.bf16.msra.mxu0 0
    %73 = vmatprep.subr.bf16.mxu0 0
    %74 = vmatpush1.bf16.msra.mxu0 0
    %75 = vmatprep.subr.bf16.mxu0 0
    %76 = vmatpush1.bf16.msra.mxu0 0
    %77 = vmatprep.subr.bf16.mxu0 0
    %78 = vmatpush1.bf16.msra.mxu0 0
    %79 = vmatprep.subr.bf16.mxu0 0
    %80 = vmatpush1.bf16.msra.mxu0 0
    %81 = vmatprep.subr.bf16.mxu0 0
    %82 = vmatpush1.bf16.msra.mxu0 0
    %83 = vmatprep.subr.bf16.mxu0 0
    %84 = vmatpush1.bf16.msra.mxu0 0
    %85 = vmatprep.mubr.bf16.mxu0 0
    %86 = vmatmul.mubr.bf16.gmra.mrb[0].mxu0 %v44
    %v87 = vpop.f32.mrb[0].mxu0
    %v88 = vadd.f32 0.0, %v87
    %v89 = vpop.f32.mrb[0].mxu0
    %v90 = vadd.f32 0.0, %v89
    %v91 = vpop.f32.mrb[0].mxu0
    %v92 = vpop.f32.mrb[0].mxu0
    %93 = vdwg.mxu0
    %v94 = vpack.c.bf16 %v88, %v88
    %v95 = vpack.c.bf16 %v90, %v90
    %v96 = vld [vmem:[%s6] sm:$0x1]
    %v98 = vpack.i.b16 %v96, %v96
    %v100 = vlaneseq
    %v101 = vshrl.u32 %v100, 7
    %v102 = vsub.s32 0, %v101
    %v103 = vrot.slane %v98, %v102
    %v106 = vunpack.c.l.s4 1983009808
    %v107 = vunpack.c.0.s8 %v106
    %v108 = vlaneseq
    %v109 = vshrl.u32 %v108, 7
    %v110 = vsub.s32 %v107, %v109
    %v111 = vrot.slane %v103, %v110
    %112 = vrot.lane.b32.xlu0 %v111, 2
    %v113 = vpop.permute.xlu0 %112
    %v114 = vrot.slane %v113, 6
    %vm115 = vcmask 15360
    %v116 = vsel %vm115, %v114, %v113
    %v118 = vadd.bf16 %v31, %v116
    %v119 = vld [vmem:[%s7] sm:$0x1]
    %v121 = vpack.i.b16 %v119, %v119
    %v123 = vlaneseq
    %v124 = vshrl.u32 %v123, 7
    %v125 = vsub.s32 0, %v124
    %v126 = vrot.slane %v121, %v125
    %v129 = vunpack.c.l.s4 1983009808
    %v130 = vunpack.c.0.s8 %v129
    %v131 = vlaneseq
    %v132 = vshrl.u32 %v131, 7
    %v133 = vsub.s32 %v130, %v132
    %v134 = vrot.slane %v126, %v133
    %135 = vrot.lane.b32.xlu0 %v134, 4
    %v136 = vpop.permute.xlu0 %135
    %v137 = vrot.slane %v136, 6
    %vm138 = vcmask 31744
    %v139 = vsel %vm138, %v137, %v136
    %v141 = vadd.bf16 %v31, %v139
    %142 = vrot.lane.b32.xlu0 %v31, 127
    %v143 = vpop.permute.xlu0 %142
    %v144 = vrot.slane %v143, 2
    %vm145 = vcmask 1039360
    %v146 = vsel %vm145, %v143, %v144
    %v148 = vmax.bf16 %v118, %v146
    %150 = vrot.lane.b32.xlu0 %v141, 126
    %v151 = vpop.permute.xlu0 %150
    %v152 = vrot.slane %v151, 2
    %vm153 = vcmask 1031168
    %v154 = vsel %vm153, %v151, %v152
    %v156 = vmax.bf16 %v148, %v154
    %v159 = vrot.slane %v94, 6
    %v160 = vrot.slane %v95, 6
    %161 = vrot.lane.b32.xlu0 %v159, 127
    %v162 = vpop.permute.xlu0 %161
    %163 = vrot.lane.b32.xlu0 %v160, 127
    %v164 = vpop.permute.xlu0 %163
    %v165 = vsel %vm145, %v162, %v164
    %v166 = vrot.slane %v94, 4
    %v167 = vrot.slane %v95, 4
    %168 = vrot.lane.b32.xlu0 %v166, 126
    %v169 = vpop.permute.xlu0 %168
    %170 = vrot.lane.b32.xlu0 %v167, 126
    %v171 = vpop.permute.xlu0 %170
    %v172 = vsel %vm153, %v169, %v171
    %v173 = vrot.slane %v94, 2
    %v174 = vrot.slane %v95, 2
    %175 = vrot.lane.b32.xlu0 %v173, 125
    %v176 = vpop.permute.xlu0 %175
    %177 = vrot.lane.b32.xlu0 %v174, 125
    %v178 = vpop.permute.xlu0 %177
    %vm179 = vcmask 1022976
    %v180 = vsel %vm179, %v176, %v178
    %181 = vrot.lane.b32.xlu0 %v94, 124
    %v182 = vpop.permute.xlu0 %181
    %183 = vrot.lane.b32.xlu0 %v95, 124
    %v184 = vpop.permute.xlu0 %183
    %vm185 = vcmask 1014784
    %v186 = vsel %vm185, %v182, %v184
    %187 = vrot.lane.b32.xlu0 %v159, 123
    %v188 = vpop.permute.xlu0 %187
    %189 = vrot.lane.b32.xlu0 %v160, 123
    %v190 = vpop.permute.xlu0 %189
    %vm191 = vcmask 1006592
    %v192 = vsel %vm191, %v188, %v190
    %193 = vrot.lane.b32.xlu0 %v166, 122
    %v194 = vpop.permute.xlu0 %193
    %195 = vrot.lane.b32.xlu0 %v167, 122
    %v196 = vpop.permute.xlu0 %195
    %vm197 = vcmask 998400
    %v198 = vsel %vm197, %v194, %v196
    %199 = vrot.lane.b32.xlu0 %v173, 121
    %v200 = vpop.permute.xlu0 %199
    %201 = vrot.lane.b32.xlu0 %v174, 121
    %v202 = vpop.permute.xlu0 %201
    %vm203 = vcmask 990208
    %v204 = vsel %vm203, %v200, %v202
    %v207 = vunpack.c.l.s4 1983009808
    %v208 = vunpack.c.0.s8 %v207
    %v209 = vlaneseq
    %v210 = vshrl.u32 %v209, 7
    %v211 = vsub.s32 %v208, %v210
    %v212 = vrot.slane %v156, %v211
    %v213 = vcombine.high %v212, %v212
    %214 = vrot.lane.b32.xlu0 %v212, 126
    %v215 = vpop.permute.xlu0 %214
    %216 = vrot.lane.b32.xlu0 %v213, 126
    %v217 = vpop.permute.xlu0 %216
    %v218 = vsel %vm153, %v215, %v217
    %v221 = vsel %vm46, %v94, %v165
    %vm222 = vcmask 1043456
    %v224 = vsel %vm222, %v221, %v172
    %vm225 = vcmask 1045504
    %v227 = vsel %vm225, %v224, %v180
    %v231 = vsel %vm46, %v186, %v192
    %v233 = vsel %vm222, %v231, %v198
    %v235 = vsel %vm225, %v233, %v204
    %v237 = vld [vmem:[%s2] sm:$0xf]
    %v238 = vld [vmem:[%s2 + $0x4] sm:$0xf]
    %v239 = vld [vmem:[%s2 + $0x8] sm:$0xf]
    %v240 = vld [vmem:[%s2 + $0xc] sm:$0xf]
    %v245 = vunpack.c.l.b16 %v237
    %v246 = vunpack.c.l.b16 %v238
    %v247 = vunpack.c.l.b16 %v239
    %v248 = vunpack.c.l.b16 %v240
    %v249 = vpack.c.b16 %v246, %v245
    %v250 = vpack.c.b16 %v248, %v247
    %vm251 = vcmask 293888
    %v253 = vsel %vm251, %v249, 0
    %v256 = vsel %vm251, %v250, 0
    %v259 = vsel %vm46, %v218, 0
    %261 = vmatprep.subr.bf16.mxu0 0
    %262 = vmatpush1.bf16.msra.mxu0 %v227
    %263 = vmatprep.subr.bf16.mxu0 0
    %264 = vmatpush1.bf16.msra.mxu0 %v235
    %265 = vmatprep.subr.bf16.mxu0 0
    %266 = vmatpush1.bf16.msra.mxu0 %v259
    %267 = vmatprep.subr.bf16.mxu0 0
    %268 = vmatpush1.bf16.msra.mxu0 0
    %269 = vmatprep.subr.bf16.mxu0 0
    %270 = vmatpush1.bf16.msra.mxu0 0
    %271 = vmatprep.subr.bf16.mxu0 0
    %272 = vmatpush1.bf16.msra.mxu0 0
    %273 = vmatprep.subr.bf16.mxu0 0
    %274 = vmatpush1.bf16.msra.mxu0 0
    %275 = vmatprep.subr.bf16.mxu0 0
    %276 = vmatpush1.bf16.msra.mxu0 0
    %277 = vmatprep.subr.bf16.mxu0 0
    %278 = vmatpush1.bf16.msra.mxu0 0
    %279 = vmatprep.subr.bf16.mxu0 0
    %280 = vmatpush1.bf16.msra.mxu0 0
    %281 = vmatprep.subr.bf16.mxu0 0
    %282 = vmatpush1.bf16.msra.mxu0 0
    %283 = vmatprep.subr.bf16.mxu0 0
    %284 = vmatpush1.bf16.msra.mxu0 0
    %285 = vmatprep.subr.bf16.mxu0 0
    %286 = vmatpush1.bf16.msra.mxu0 0
    %287 = vmatprep.subr.bf16.mxu0 0
    %288 = vmatpush1.bf16.msra.mxu0 0
    %289 = vmatprep.subr.bf16.mxu0 0
    %290 = vmatpush1.bf16.msra.mxu0 0
    %291 = vmatprep.subr.bf16.mxu0 0
    %292 = vmatpush1.bf16.msra.mxu0 0
    %293 = vmatprep.mubr.bf16.mxu0 0
    %294 = vmatmul.mubr.bf16.gmra.mrb[0].mxu0 %v253
    %v295 = vpop.f32.mrb[0].mxu0
    %v296 = vadd.f32 0.0, %v295
    %v297 = vpop.f32.mrb[0].mxu0
    %v298 = vpop.f32.mrb[0].mxu0
    %v299 = vadd.f32 0.0, %v298
    %v300 = vpop.f32.mrb[0].mxu0
    %301 = vmatprep.mubr.bf16.mxu0 0
    %302 = vmatmul.mubr.bf16.gmra.mrb[0].mxu0 %v256
    %v303 = vpop.f32.mrb[0].mxu0
    %v304 = vadd.f32 0.0, %v303
    %v305 = vpop.f32.mrb[0].mxu0
    %v306 = vpop.f32.mrb[0].mxu0
    %v307 = vadd.f32 0.0, %v306
    %v308 = vpop.f32.mrb[0].mxu0
    %309 = vdwg.mxu0
    %v310 = vld [vmem:[%s5] sm:$0x1]
    %v312 = vlaneseq
    %v313 = vshrl.u32 %v312, 7
    %v314 = vsub.s32 0, %v313
    %v315 = vrot.slane %v310, %v314
    %v317 = vmul.f32 %v296, %v315
    %v318 = vmul.f32 %v299, %v315
    %v319 = vmul.f32 %v304, %v315
    %v320 = vmul.f32 %v307, %v315
    %321 = vadd.xlane.f32.xlu0 %v317
    %v322 = vpop.xlane.xlu0 %321
    %323 = vadd.xlane.f32.xlu0 %v318
    %v324 = vpop.xlane.xlu0 %323
    %325 = vadd.xlane.f32.xlu0 %v319
    %v326 = vpop.xlane.xlu0 %325
    %327 = vadd.xlane.f32.xlu0 %v320
    %v328 = vpop.xlane.xlu0 %327
    %v329 = vmul.f32 %v322, 0.03125
    %v330 = vmul.f32 %v324, 0.03125
    %v331 = vmul.f32 %v326, 0.03125
    %v332 = vmul.f32 %v328, 0.03125
    %v333 = vmul.f32 %v317, %v317
    %v334 = vmul.f32 %v318, %v318
    %v335 = vmul.f32 %v319, %v319
    %v336 = vmul.f32 %v320, %v320
    %337 = vadd.xlane.f32.xlu0 %v333
    %v338 = vpop.xlane.xlu0 %337
    %339 = vadd.xlane.f32.xlu0 %v334
    %v340 = vpop.xlane.xlu0 %339
    %341 = vadd.xlane.f32.xlu0 %v335
    %v342 = vpop.xlane.xlu0 %341
    %343 = vadd.xlane.f32.xlu0 %v336
    %v344 = vpop.xlane.xlu0 %343
    %v345 = vmul.f32 %v338, 0.03125
    %v346 = vmul.f32 %v340, 0.03125
    %v347 = vmul.f32 %v342, 0.03125
    %v348 = vmul.f32 %v344, 0.03125
    %v349 = vmul.f32 %v329, %v329
    %v350 = vmul.f32 %v330, %v330
    %v351 = vmul.f32 %v331, %v331
    %v352 = vmul.f32 %v332, %v332
    %v353 = vsub.f32 %v345, %v349
    %v354 = vsub.f32 %v346, %v350
    %v355 = vsub.f32 %v347, %v351
    %v356 = vsub.f32 %v348, %v352
    %v357 = vld [vmem:[%s3] sm:$0xff]
    %v358 = vld [vmem:[%s3 + $0x8] sm:$0xff]
    %v359 = vld [vmem:[%s3 + $0x10] sm:$0xff]
    %v360 = vld [vmem:[%s3 + $0x18] sm:$0xff]
    %v361 = vsub.f32 %v296, %v329
    %v362 = vsub.f32 %v299, %v330
    %v363 = vsub.f32 %v304, %v331
    %v364 = vsub.f32 %v307, %v332
    %366 = vset.pattern.permute.xlu0 0
    %367 = vperm.xlu0 %366, %v357
    %v368 = vpop.permute.xlu0 %367
    %371 = vset.pattern.permute.xlu0 0
    %372 = vperm.xlu0 %371, %v358
    %v373 = vpop.permute.xlu0 %372
    %376 = vset.pattern.permute.xlu0 0
    %377 = vperm.xlu0 %376, %v359
    %v378 = vpop.permute.xlu0 %377
    %381 = vset.pattern.permute.xlu0 0
    %382 = vperm.xlu0 %381, %v360
    %v383 = vpop.permute.xlu0 %382
    %v385 = vmul.f32 %v368, %v361
    %v386 = vmul.f32 %v373, %v362
    %v387 = vmul.f32 %v378, %v363
    %v388 = vmul.f32 %v383, %v364
    %v389 = vadd.f32 %v353, 1e-05
    %v390 = vadd.f32 %v354, 1e-05
    %v391 = vadd.f32 %v355, 1e-05
    %v392 = vadd.f32 %v356, 1e-05
    %v393 = vrsqrt.pop %v389
    %v394 = vrsqrt.pop %v390
    %v395 = vrsqrt.pop %v391
    %v396 = vrsqrt.pop %v392
    %v397 = vmul.f32 %v385, %v393
    %v398 = vmul.f32 %v386, %v394
    %v399 = vmul.f32 %v387, %v395
    %v400 = vmul.f32 %v388, %v396
    %v401 = vld [vmem:[%s4] sm:$0xff]
    %v402 = vld [vmem:[%s4 + $0x8] sm:$0xff]
    %v403 = vld [vmem:[%s4 + $0x10] sm:$0xff]
    %v404 = vld [vmem:[%s4 + $0x18] sm:$0xff]
    %406 = vset.pattern.permute.xlu0 0
    %407 = vperm.xlu0 %406, %v401
    %v408 = vpop.permute.xlu0 %407
    %411 = vset.pattern.permute.xlu0 0
    %412 = vperm.xlu0 %411, %v402
    %v413 = vpop.permute.xlu0 %412
    %416 = vset.pattern.permute.xlu0 0
    %417 = vperm.xlu0 %416, %v403
    %v418 = vpop.permute.xlu0 %417
    %421 = vset.pattern.permute.xlu0 0
    %422 = vperm.xlu0 %421, %v404
    %v423 = vpop.permute.xlu0 %422
    %v425 = vadd.f32 %v397, %v408
    %v426 = vadd.f32 %v398, %v413
    %v427 = vadd.f32 %v399, %v418
    %v428 = vadd.f32 %v400, %v423
    %v429 = vmax.f32 %v425, 0.0
    %v430 = vmax.f32 %v426, 0.0
    %v431 = vmax.f32 %v427, 0.0
    %v432 = vmax.f32 %v428, 0.0
    %433 = vst [vmem:[#allocation2] sm:$0xff] %v429
    %434 = vst [vmem:[#allocation2 + $0x8] sm:$0xff] %v430
    %435 = vst [vmem:[#allocation2 + $0x10] sm:$0xff] %v431
    %436 = vst [vmem:[#allocation2 + $0x18] sm:$0xff] %v432
    // Predicated region
    $region34: #{tpu_custom_call.1} parent=1 // pred_check
      _
    $region35: #{tpu_custom_call.1} parent=1 // pred_check_branch
      %438 = sbr.rel (0) target = $region37
    $region36: #{tpu_custom_call.1} parent=1 // pred_region
      %s440 = ssub.s32 512, 512
      %441 = vsyncadd [#allocation3], %s440
      %s442 = sshll.u32 [#allocation2], 4
      %s443 = int_to_ptr.vmem [resolvable:$true] %s442
      %448 = dma.vmem_to_hbm [thread:$0]  %s443, 512, %s8, [#allocation3], 128, 128, 8
    $region37: #{tpu_custom_call.1} parent=1 // pred_fallthru
      _
    // Predicated region
    $region38: #{tpu_custom_call.1} parent=1 // pred_check
      _
    $region39: #{tpu_custom_call.1} parent=1 // pred_check_branch
      %450 = sbr.rel (0) target = $region41
    $region40: #{tpu_custom_call.1} parent=1 // pred_region
      %451 = dma.done [#allocation3], 512
    $region41: #{tpu_custom_call.1} parent=1 // pred_fallthru
      _
    %452 = vsyncpa [#allocation3], 1

</llo_original>
